<compile_context>
chip_gen: v7x
topology: tpu7x:2x2x1
jax: 0.10.0
libtpu: 0.0.40
codegen_flags: <defaults>
</compile_context>

<pallas_src>
import jax
import jax.numpy as jnp
import numpy as np
from jax.experimental import pallas as pl
from jax.experimental.pallas import tpu as pltpu


def fused_kernel(x1_ref, x2_ref, inp_ref, o_ref):
    # x1_ref: (M, K)   x2_ref: (K, D1*D2)   inp_ref: (D1, D2)   o_ref: (M, D1*D2)
    D1, D2 = inp_ref.shape

    # Single MXU pass: v1[i, 3j+k] = v2[i,j,k]; the (6,18) result fits one vreg.
    v1 = jnp.dot(x1_ref[...], x2_ref[...], preferred_element_type=jnp.float32)
    inp = inp_ref[...]

    # Column blocks of v1: blk[j][i, k] = v2[i, j, k]   (static lane slices)
    blk = [v1[:, j * D2:(j + 1) * D2] for j in range(D1)]

    # out[:, 3j:3j+3] = v2[:, j, :] * inp[j, :] + v2[j, :, :]
    out_cols = []
    for j in range(D1):
        # transposed term t[i, k] = v2[j, i, k] = blk[i][j, k]
        t = jnp.concatenate([blk[i][j:j + 1, :] for i in range(D1)], axis=0)
        out_cols.append(blk[j] * inp[j:j + 1, :] + t)

    # One lane-dense (6,18) store (no masked vst on a width-3 last dim).
    o_ref[...] = jnp.concatenate(out_cols, axis=1).astype(o_ref.dtype)


def model_forward(x1, x2, inp):
    M, K = x1.shape
    K2, N = x2.shape
    assert K == K2
    D0, D2 = 6, 3
    assert M == D0, "reshape(6, -1, 3) requires the mm result to have 6 rows"
    assert N % D2 == 0
    D1 = N // D2
    assert inp.shape == (D1, D2)
    assert D1 == D0, "v4 + v2 requires the middle dim to equal 6"

    out_flat = pl.pallas_call(
        fused_kernel,
        out_shape=jax.ShapeDtypeStruct((M, N), jnp.float32),
        in_specs=[
            pl.BlockSpec(memory_space=pltpu.MemorySpace.VMEM),
            pl.BlockSpec(memory_space=pltpu.MemorySpace.VMEM),
            pl.BlockSpec(memory_space=pltpu.MemorySpace.VMEM),
        ],
        out_specs=pl.BlockSpec(memory_space=pltpu.MemorySpace.VMEM),
    )(x1, x2, inp)

    # Contiguous reshape -> torch layout (6, 6, 3); metadata-only, no data movement.
    return out_flat.reshape(M, D1, D2)


if __name__ == "__main__":
    key = jax.random.PRNGKey(0)
    k1, k2, k3 = jax.random.split(key, 3)
    x1 = jax.random.normal(k1, (6, 4), dtype=jnp.float32)
    x2 = jax.random.normal(k2, (4, 18), dtype=jnp.float32)
    inp = jax.random.normal(k3, (6, 3), dtype=jnp.float32)

    out = jax.block_until_ready(jax.jit(model_forward)(x1, x2, inp))

    # pure-JAX reference mirroring the torch forward exactly
    v1 = x1 @ x2
    v2 = v1.reshape(6, -1, 3)
    v3 = v2 * inp
    v4 = jnp.transpose(v3, (1, 0, 2))
    v5 = v4 + v2
    v6 = jnp.transpose(v5, (1, 0, 2))

    assert out.shape == (6, 6, 3), out.shape
    np.testing.assert_allclose(np.asarray(out), np.asarray(v6), rtol=1e-5, atol=1e-5)
    print("KERNEL_OK")
</pallas_src>

<mosaic_0001>
module attributes {stable_mosaic.version = 11 : i64} {
  func.func @fused_kernel(%arg0: memref<6x4xf32, #tpu.memory_space<vmem>>, %arg1: memref<4x18xf32, #tpu.memory_space<vmem>>, %arg2: memref<6x3xf32, #tpu.memory_space<vmem>>, %arg3: memref<6x18xf32, #tpu.memory_space<vmem>>) attributes {dimension_semantics = [], scalar_prefetch = 0 : i64, scratch_operands = 0 : i64, tpu.core_type = #tpu.core_type<tc>} {
    %c0 = arith.constant 0 : index
    %c0_0 = arith.constant 0 : index
    %0 = vector.load %arg0[%c0, %c0_0] : memref<6x4xf32, #tpu.memory_space<vmem>>, vector<6x4xf32>
    %c0_1 = arith.constant 0 : index
    %c0_2 = arith.constant 0 : index
    %1 = vector.load %arg1[%c0_1, %c0_2] : memref<4x18xf32, #tpu.memory_space<vmem>>, vector<4x18xf32>
    %cst = arith.constant dense<0.000000e+00> : vector<6x18xf32>
    %2 = tpu.matmul %0, %1, %cst {dimension_numbers = #tpu.dot_dimension_numbers<[1], [0], [0], [1], [0, 0, 1, 1], [], []>} : vector<6x4xf32>, vector<4x18xf32>, vector<6x18xf32> -> vector<6x18xf32>
    %c0_3 = arith.constant 0 : index
    %c0_4 = arith.constant 0 : index
    %3 = vector.load %arg2[%c0_3, %c0_4] : memref<6x3xf32, #tpu.memory_space<vmem>>, vector<6x3xf32>
    %4 = vector.extract_strided_slice %2 {offsets = [0, 0], sizes = [6, 3], strides = [1, 1]} : vector<6x18xf32> to vector<6x3xf32>
    %5 = vector.extract_strided_slice %2 {offsets = [0, 3], sizes = [6, 3], strides = [1, 1]} : vector<6x18xf32> to vector<6x3xf32>
    %6 = vector.extract_strided_slice %2 {offsets = [0, 6], sizes = [6, 3], strides = [1, 1]} : vector<6x18xf32> to vector<6x3xf32>
    %7 = vector.extract_strided_slice %2 {offsets = [0, 9], sizes = [6, 3], strides = [1, 1]} : vector<6x18xf32> to vector<6x3xf32>
    %8 = vector.extract_strided_slice %2 {offsets = [0, 12], sizes = [6, 3], strides = [1, 1]} : vector<6x18xf32> to vector<6x3xf32>
    %9 = vector.extract_strided_slice %2 {offsets = [0, 15], sizes = [6, 3], strides = [1, 1]} : vector<6x18xf32> to vector<6x3xf32>
    %10 = vector.extract_strided_slice %4 {offsets = [0, 0], sizes = [1, 3], strides = [1, 1]} : vector<6x3xf32> to vector<1x3xf32>
    %11 = vector.extract_strided_slice %5 {offsets = [0, 0], sizes = [1, 3], strides = [1, 1]} : vector<6x3xf32> to vector<1x3xf32>
    %12 = vector.extract_strided_slice %6 {offsets = [0, 0], sizes = [1, 3], strides = [1, 1]} : vector<6x3xf32> to vector<1x3xf32>
    %13 = vector.extract_strided_slice %7 {offsets = [0, 0], sizes = [1, 3], strides = [1, 1]} : vector<6x3xf32> to vector<1x3xf32>
    %14 = vector.extract_strided_slice %8 {offsets = [0, 0], sizes = [1, 3], strides = [1, 1]} : vector<6x3xf32> to vector<1x3xf32>
    %15 = vector.extract_strided_slice %9 {offsets = [0, 0], sizes = [1, 3], strides = [1, 1]} : vector<6x3xf32> to vector<1x3xf32>
    %16 = tpu.concatenate %10, %11, %12, %13, %14, %15 in 0 : vector<1x3xf32>, vector<1x3xf32>, vector<1x3xf32>, vector<1x3xf32>, vector<1x3xf32>, vector<1x3xf32> -> vector<6x3xf32>
    %17 = vector.extract_strided_slice %3 {offsets = [0, 0], sizes = [1, 3], strides = [1, 1]} : vector<6x3xf32> to vector<1x3xf32>
    %18 = vector.broadcast %17 : vector<1x3xf32> to vector<6x3xf32>
    %19 = arith.mulf %4, %18 : vector<6x3xf32>
    %20 = arith.addf %19, %16 : vector<6x3xf32>
    %21 = vector.extract_strided_slice %4 {offsets = [1, 0], sizes = [1, 3], strides = [1, 1]} : vector<6x3xf32> to vector<1x3xf32>
    %22 = vector.extract_strided_slice %5 {offsets = [1, 0], sizes = [1, 3], strides = [1, 1]} : vector<6x3xf32> to vector<1x3xf32>
    %23 = vector.extract_strided_slice %6 {offsets = [1, 0], sizes = [1, 3], strides = [1, 1]} : vector<6x3xf32> to vector<1x3xf32>
    %24 = vector.extract_strided_slice %7 {offsets = [1, 0], sizes = [1, 3], strides = [1, 1]} : vector<6x3xf32> to vector<1x3xf32>
    %25 = vector.extract_strided_slice %8 {offsets = [1, 0], sizes = [1, 3], strides = [1, 1]} : vector<6x3xf32> to vector<1x3xf32>
    %26 = vector.extract_strided_slice %9 {offsets = [1, 0], sizes = [1, 3], strides = [1, 1]} : vector<6x3xf32> to vector<1x3xf32>
    %27 = tpu.concatenate %21, %22, %23, %24, %25, %26 in 0 : vector<1x3xf32>, vector<1x3xf32>, vector<1x3xf32>, vector<1x3xf32>, vector<1x3xf32>, vector<1x3xf32> -> vector<6x3xf32>
    %28 = vector.extract_strided_slice %3 {offsets = [1, 0], sizes = [1, 3], strides = [1, 1]} : vector<6x3xf32> to vector<1x3xf32>
    %29 = vector.broadcast %28 : vector<1x3xf32> to vector<6x3xf32>
    %30 = arith.mulf %5, %29 : vector<6x3xf32>
    %31 = arith.addf %30, %27 : vector<6x3xf32>
    %32 = vector.extract_strided_slice %4 {offsets = [2, 0], sizes = [1, 3], strides = [1, 1]} : vector<6x3xf32> to vector<1x3xf32>
    %33 = vector.extract_strided_slice %5 {offsets = [2, 0], sizes = [1, 3], strides = [1, 1]} : vector<6x3xf32> to vector<1x3xf32>
    %34 = vector.extract_strided_slice %6 {offsets = [2, 0], sizes = [1, 3], strides = [1, 1]} : vector<6x3xf32> to vector<1x3xf32>
    %35 = vector.extract_strided_slice %7 {offsets = [2, 0], sizes = [1, 3], strides = [1, 1]} : vector<6x3xf32> to vector<1x3xf32>
    %36 = vector.extract_strided_slice %8 {offsets = [2, 0], sizes = [1, 3], strides = [1, 1]} : vector<6x3xf32> to vector<1x3xf32>
    %37 = vector.extract_strided_slice %9 {offsets = [2, 0], sizes = [1, 3], strides = [1, 1]} : vector<6x3xf32> to vector<1x3xf32>
    %38 = tpu.concatenate %32, %33, %34, %35, %36, %37 in 0 : vector<1x3xf32>, vector<1x3xf32>, vector<1x3xf32>, vector<1x3xf32>, vector<1x3xf32>, vector<1x3xf32> -> vector<6x3xf32>
    %39 = vector.extract_strided_slice %3 {offsets = [2, 0], sizes = [1, 3], strides = [1, 1]} : vector<6x3xf32> to vector<1x3xf32>
    %40 = vector.broadcast %39 : vector<1x3xf32> to vector<6x3xf32>
    %41 = arith.mulf %6, %40 : vector<6x3xf32>
    %42 = arith.addf %41, %38 : vector<6x3xf32>
    %43 = vector.extract_strided_slice %4 {offsets = [3, 0], sizes = [1, 3], strides = [1, 1]} : vector<6x3xf32> to vector<1x3xf32>
    %44 = vector.extract_strided_slice %5 {offsets = [3, 0], sizes = [1, 3], strides = [1, 1]} : vector<6x3xf32> to vector<1x3xf32>
    %45 = vector.extract_strided_slice %6 {offsets = [3, 0], sizes = [1, 3], strides = [1, 1]} : vector<6x3xf32> to vector<1x3xf32>
    %46 = vector.extract_strided_slice %7 {offsets = [3, 0], sizes = [1, 3], strides = [1, 1]} : vector<6x3xf32> to vector<1x3xf32>
    %47 = vector.extract_strided_slice %8 {offsets = [3, 0], sizes = [1, 3], strides = [1, 1]} : vector<6x3xf32> to vector<1x3xf32>
    %48 = vector.extract_strided_slice %9 {offsets = [3, 0], sizes = [1, 3], strides = [1, 1]} : vector<6x3xf32> to vector<1x3xf32>
    %49 = tpu.concatenate %43, %44, %45, %46, %47, %48 in 0 : vector<1x3xf32>, vector<1x3xf32>, vector<1x3xf32>, vector<1x3xf32>, vector<1x3xf32>, vector<1x3xf32> -> vector<6x3xf32>
    %50 = vector.extract_strided_slice %3 {offsets = [3, 0], sizes = [1, 3], strides = [1, 1]} : vector<6x3xf32> to vector<1x3xf32>
    %51 = vector.broadcast %50 : vector<1x3xf32> to vector<6x3xf32>
    %52 = arith.mulf %7, %51 : vector<6x3xf32>
    %53 = arith.addf %52, %49 : vector<6x3xf32>
    %54 = vector.extract_strided_slice %4 {offsets = [4, 0], sizes = [1, 3], strides = [1, 1]} : vector<6x3xf32> to vector<1x3xf32>
    %55 = vector.extract_strided_slice %5 {offsets = [4, 0], sizes = [1, 3], strides = [1, 1]} : vector<6x3xf32> to vector<1x3xf32>
    %56 = vector.extract_strided_slice %6 {offsets = [4, 0], sizes = [1, 3], strides = [1, 1]} : vector<6x3xf32> to vector<1x3xf32>
    %57 = vector.extract_strided_slice %7 {offsets = [4, 0], sizes = [1, 3], strides = [1, 1]} : vector<6x3xf32> to vector<1x3xf32>
    %58 = vector.extract_strided_slice %8 {offsets = [4, 0], sizes = [1, 3], strides = [1, 1]} : vector<6x3xf32> to vector<1x3xf32>
    %59 = vector.extract_strided_slice %9 {offsets = [4, 0], sizes = [1, 3], strides = [1, 1]} : vector<6x3xf32> to vector<1x3xf32>
    %60 = tpu.concatenate %54, %55, %56, %57, %58, %59 in 0 : vector<1x3xf32>, vector<1x3xf32>, vector<1x3xf32>, vector<1x3xf32>, vector<1x3xf32>, vector<1x3xf32> -> vector<6x3xf32>
    %61 = vector.extract_strided_slice %3 {offsets = [4, 0], sizes = [1, 3], strides = [1, 1]} : vector<6x3xf32> to vector<1x3xf32>
    %62 = vector.broadcast %61 : vector<1x3xf32> to vector<6x3xf32>
    %63 = arith.mulf %8, %62 : vector<6x3xf32>
    %64 = arith.addf %63, %60 : vector<6x3xf32>
    %65 = vector.extract_strided_slice %4 {offsets = [5, 0], sizes = [1, 3], strides = [1, 1]} : vector<6x3xf32> to vector<1x3xf32>
    %66 = vector.extract_strided_slice %5 {offsets = [5, 0], sizes = [1, 3], strides = [1, 1]} : vector<6x3xf32> to vector<1x3xf32>
    %67 = vector.extract_strided_slice %6 {offsets = [5, 0], sizes = [1, 3], strides = [1, 1]} : vector<6x3xf32> to vector<1x3xf32>
    %68 = vector.extract_strided_slice %7 {offsets = [5, 0], sizes = [1, 3], strides = [1, 1]} : vector<6x3xf32> to vector<1x3xf32>
    %69 = vector.extract_strided_slice %8 {offsets = [5, 0], sizes = [1, 3], strides = [1, 1]} : vector<6x3xf32> to vector<1x3xf32>
    %70 = vector.extract_strided_slice %9 {offsets = [5, 0], sizes = [1, 3], strides = [1, 1]} : vector<6x3xf32> to vector<1x3xf32>
    %71 = tpu.concatenate %65, %66, %67, %68, %69, %70 in 0 : vector<1x3xf32>, vector<1x3xf32>, vector<1x3xf32>, vector<1x3xf32>, vector<1x3xf32>, vector<1x3xf32> -> vector<6x3xf32>
    %72 = vector.extract_strided_slice %3 {offsets = [5, 0], sizes = [1, 3], strides = [1, 1]} : vector<6x3xf32> to vector<1x3xf32>
    %73 = vector.broadcast %72 : vector<1x3xf32> to vector<6x3xf32>
    %74 = arith.mulf %9, %73 : vector<6x3xf32>
    %75 = arith.addf %74, %71 : vector<6x3xf32>
    %76 = tpu.concatenate %20, %31, %42, %53, %64, %75 in 1 : vector<6x3xf32>, vector<6x3xf32>, vector<6x3xf32>, vector<6x3xf32>, vector<6x3xf32>, vector<6x3xf32> -> vector<6x18xf32>
    %c0_5 = arith.constant 0 : index
    %c0_6 = arith.constant 0 : index
    %77 = vector.load %arg3[%c0_5, %c0_6] : memref<6x18xf32, #tpu.memory_space<vmem>>, vector<6x18xf32>
    tpu.vector_store %arg3[%c0_5, %c0_6], %76 {strides = array<i32>} : memref<6x18xf32, #tpu.memory_space<vmem>>, vector<6x18xf32>,
    return
  }
}

</mosaic_0001>

<llo_original>
// kernel: model_forward.1
$region0: #{model_forward.1}
  #allocation0 [shape = 'u32[]', space=smem, size = 0x4, offset = 0x4, fixed_abs, tag = 'smem constant byte address 0x4 - core index']
  #allocation1 [shape = 'u32[144,128]{1,0:T(1,128)}', space=vmem, size = 0x12000, scoped, tag = 'internal scratch']
  %s0 = inlined_call_operand.vmem [shape: f32[6,4], index: 0, kind: input, shape index: {}]
  %s1 = inlined_call_operand.vmem [shape: f32[4,18], index: 1, kind: input, shape index: {}]
  %s2 = inlined_call_operand.vmem [shape: f32[6,3], index: 2, kind: input, shape index: {}]
  %s3 = inlined_call_operand.vmem [shape: f32[6,18], index: 3, kind: output, shape index: {}]
  %s4 = sld [smem:[#allocation0]]
  $region22: #{model_forward.1} parent=0
    _
  %s6 = ssub.s32 1, %s4
  %s7 = scalar_select 0, %s6, %s4
  // Predicated region
  $region2: #{model_forward.1} parent=0 // pred_check
    _
  $region3: #{model_forward.1} parent=0 // pred_check_branch
    %9 = sbr.rel (0) target = $region5
  $region4: #{model_forward.1} parent=0 // pred_region
    _
  $region5: #{model_forward.1} parent=0 // pred_fallthru
    _
  // Predicated region
  $region6: #{model_forward.1} parent=0 // pred_check
    _
  $region7: #{model_forward.1} parent=0 // pred_check_branch
    %11 = sbr.rel (0) target = $region9
  $region8: #{model_forward.1} parent=0 // pred_region
    _
  $region9: #{model_forward.1} parent=0 // pred_fallthru
    _
  // Predicated region
  $region10: #{model_forward.1} parent=0 // pred_check
    _
  $region11: #{model_forward.1} parent=0 // pred_check_branch
    %13 = sbr.rel (0) target = $region13
  $region12: #{model_forward.1} parent=0 // pred_region
    _
  $region13: #{model_forward.1} parent=0 // pred_fallthru
    _
  %v14 = vld [vmem:[%s0] sm:$0x3f]
  %v15 = vld [vmem:[%s1] sm:$0xf]
  %vm16 = vcmask 31744
  %v18 = vsel %vm16, %v14, 0
  %vm20 = vcmask 1043456
  %v22 = vsel %vm20, %v15, 0
  %24 = vmatprep.subr.mxu0 0.0
  %25 = vmatpush1.msra.mxu0 %v22
  %26 = vmatprep.subr.mxu0 0.0
  %27 = vmatpush1.msra.mxu0 0.0
  %28 = vmatprep.subr.mxu0 0.0
  %29 = vmatpush1.msra.mxu0 0.0
  %30 = vmatprep.subr.mxu0 0.0
  %31 = vmatpush1.msra.mxu0 0.0
  %32 = vmatprep.subr.mxu0 0.0
  %33 = vmatpush1.msra.mxu0 0.0
  %34 = vmatprep.subr.mxu0 0.0
  %35 = vmatpush1.msra.mxu0 0.0
  %36 = vmatprep.subr.mxu0 0.0
  %37 = vmatpush1.msra.mxu0 0.0
  %38 = vmatprep.subr.mxu0 0.0
  %39 = vmatpush1.msra.mxu0 0.0
  %40 = vmatprep.subr.mxu0 0.0
  %41 = vmatpush1.msra.mxu0 0.0
  %42 = vmatprep.subr.mxu0 0.0
  %43 = vmatpush1.msra.mxu0 0.0
  %44 = vmatprep.subr.mxu0 0.0
  %45 = vmatpush1.msra.mxu0 0.0
  %46 = vmatprep.subr.mxu0 0.0
  %47 = vmatpush1.msra.mxu0 0.0
  %48 = vmatprep.subr.mxu0 0.0
  %49 = vmatpush1.msra.mxu0 0.0
  %50 = vmatprep.subr.mxu0 0.0
  %51 = vmatpush1.msra.mxu0 0.0
  %52 = vmatprep.subr.mxu0 0.0
  %53 = vmatpush1.msra.mxu0 0.0
  %54 = vmatprep.subr.mxu0 0.0
  %55 = vmatpush1.msra.mxu0 0.0
  %56 = vmatprep.subr.mxu0 0.0
  %57 = vmatpush1.msra.mxu0 0.0
  %58 = vmatprep.subr.mxu0 0.0
  %59 = vmatpush1.msra.mxu0 0.0
  %60 = vmatprep.subr.mxu0 0.0
  %61 = vmatpush1.msra.mxu0 0.0
  %62 = vmatprep.subr.mxu0 0.0
  %63 = vmatpush1.msra.mxu0 0.0
  %64 = vmatprep.subr.mxu0 0.0
  %65 = vmatpush1.msra.mxu0 0.0
  %66 = vmatprep.subr.mxu0 0.0
  %67 = vmatpush1.msra.mxu0 0.0
  %68 = vmatprep.subr.mxu0 0.0
  %69 = vmatpush1.msra.mxu0 0.0
  %70 = vmatprep.subr.mxu0 0.0
  %71 = vmatpush1.msra.mxu0 0.0
  %72 = vmatprep.subr.mxu0 0.0
  %73 = vmatpush1.msra.mxu0 0.0
  %74 = vmatprep.subr.mxu0 0.0
  %75 = vmatpush1.msra.mxu0 0.0
  %76 = vmatprep.subr.mxu0 0.0
  %77 = vmatpush1.msra.mxu0 0.0
  %78 = vmatprep.subr.mxu0 0.0
  %79 = vmatpush1.msra.mxu0 0.0
  %80 = vmatprep.subr.mxu0 0.0
  %81 = vmatpush1.msra.mxu0 0.0
  %82 = vmatprep.subr.mxu0 0.0
  %83 = vmatpush1.msra.mxu0 0.0
  %84 = vmatprep.subr.mxu0 0.0
  %85 = vmatpush1.msra.mxu0 0.0
  %86 = vmatprep.subr.mxu0 0.0
  %87 = vmatpush1.msra.mxu0 0.0
  %88 = vmatprep.mubr.f32.mxu0 0.0
  %89 = vmatmul.mubr.f32.gmra.mrb[0].mxu0 %v18
  %v90 = vpop.f32.mrb[0].mxu0
  %v91 = vadd.f32 0.0, %v90
  %v92 = vpop.f32.mrb[0].mxu0
  %93 = vdwg.mxu0
  %v94 = vld [vmem:[%s2] sm:$0x3f]
  %v96 = vrot.slane %v91, 7
  %97 = vrot.lane.b32.xlu0 %v96, 125
  %v98 = vpop.permute.xlu0 %97
  %v100 = vrot.slane %v91, 6
  %101 = vrot.lane.b32.xlu0 %v100, 122
  %v102 = vpop.permute.xlu0 %101
  %v104 = vrot.slane %v91, 5
  %105 = vrot.lane.b32.xlu0 %v104, 119
  %v106 = vpop.permute.xlu0 %105
  %v108 = vrot.slane %v91, 4
  %109 = vrot.lane.b32.xlu0 %v108, 116
  %v110 = vpop.permute.xlu0 %109
  %v112 = vrot.slane %v91, 3
  %113 = vrot.lane.b32.xlu0 %v112, 113
  %v114 = vpop.permute.xlu0 %113
  %vm116 = vcmask 1040384
  %v117 = vsel %vm116, %v91, %v98
  %vm118 = vcmask 1041408
  %v119 = vsel %vm118, %v117, %v102
  %vm120 = vcmask 1042432
  %v121 = vsel %vm120, %v119, %v106
  %v122 = vsel %vm20, %v121, %v110
  %vm123 = vcmask 1044480
  %v124 = vsel %vm123, %v122, %v114
  %v125 = vlaneseq
  %v126 = vshrl.u32 %v125, 7
  %v127 = vsub.s32 0, %v126
  %v128 = vrot.slane %v94, %v127
  %v129 = vmul.f32 %v91, %v128
  %v130 = vadd.f32 %v129, %v124
  %v131 = vrot.slane %v91, 1
  %133 = vrot.lane.b32.xlu0 %v91, 125
  %v134 = vpop.permute.xlu0 %133
  %136 = vrot.lane.b32.xlu0 %v96, 122
  %v137 = vpop.permute.xlu0 %136
  %139 = vrot.lane.b32.xlu0 %v100, 119
  %v140 = vpop.permute.xlu0 %139
  %142 = vrot.lane.b32.xlu0 %v104, 116
  %v143 = vpop.permute.xlu0 %142
  %145 = vrot.lane.b32.xlu0 %v108, 113
  %v146 = vpop.permute.xlu0 %145
  %v148 = vsel %vm116, %v131, %v134
  %v149 = vsel %vm118, %v148, %v137
  %v150 = vsel %vm120, %v149, %v140
  %v151 = vsel %vm20, %v150, %v143
  %v152 = vsel %vm123, %v151, %v146
  %v153 = vlaneseq
  %v154 = vshrl.u32 %v153, 7
  %v155 = vsub.s32 1, %v154
  %v156 = vrot.slane %v94, %v155
  %158 = vrot.lane.b32.xlu0 %v156, 3
  %v159 = vpop.permute.xlu0 %158
  %v161 = vmul.f32 %v91, %v159
  %163 = vrot.lane.b32.xlu0 %v152, 3
  %v164 = vpop.permute.xlu0 %163
  %v166 = vadd.f32 %v161, %v164
  %v167 = vrot.slane %v91, 2
  %169 = vrot.lane.b32.xlu0 %v131, 125
  %v170 = vpop.permute.xlu0 %169
  %172 = vrot.lane.b32.xlu0 %v91, 122
  %v173 = vpop.permute.xlu0 %172
  %175 = vrot.lane.b32.xlu0 %v96, 119
  %v176 = vpop.permute.xlu0 %175
  %178 = vrot.lane.b32.xlu0 %v100, 116
  %v179 = vpop.permute.xlu0 %178
  %181 = vrot.lane.b32.xlu0 %v104, 113
  %v182 = vpop.permute.xlu0 %181
  %v184 = vsel %vm116, %v167, %v170
  %v185 = vsel %vm118, %v184, %v173
  %v186 = vsel %vm120, %v185, %v176
  %v187 = vsel %vm20, %v186, %v179
  %v188 = vsel %vm123, %v187, %v182
  %v189 = vlaneseq
  %v190 = vshrl.u32 %v189, 7
  %v191 = vsub.s32 2, %v190
  %v192 = vrot.slane %v94, %v191
  %194 = vrot.lane.b32.xlu0 %v192, 6
  %v195 = vpop.permute.xlu0 %194
  %v197 = vmul.f32 %v91, %v195
  %199 = vrot.lane.b32.xlu0 %v188, 6
  %v200 = vpop.permute.xlu0 %199
  %v202 = vadd.f32 %v197, %v200
  %204 = vrot.lane.b32.xlu0 %v167, 125
  %v205 = vpop.permute.xlu0 %204
  %207 = vrot.lane.b32.xlu0 %v131, 122
  %v208 = vpop.permute.xlu0 %207
  %210 = vrot.lane.b32.xlu0 %v91, 119
  %v211 = vpop.permute.xlu0 %210
  %213 = vrot.lane.b32.xlu0 %v96, 116
  %v214 = vpop.permute.xlu0 %213
  %216 = vrot.lane.b32.xlu0 %v100, 113
  %v217 = vpop.permute.xlu0 %216
  %v219 = vsel %vm116, %v112, %v205
  %v220 = vsel %vm118, %v219, %v208
  %v221 = vsel %vm120, %v220, %v211
  %v222 = vsel %vm20, %v221, %v214
  %v223 = vsel %vm123, %v222, %v217
  %v224 = vlaneseq
  %v225 = vshrl.u32 %v224, 7
  %v226 = vsub.s32 3, %v225
  %v227 = vrot.slane %v94, %v226
  %229 = vrot.lane.b32.xlu0 %v227, 9
  %v230 = vpop.permute.xlu0 %229
  %v232 = vmul.f32 %v91, %v230
  %234 = vrot.lane.b32.xlu0 %v223, 9
  %v235 = vpop.permute.xlu0 %234
  %v237 = vadd.f32 %v232, %v235
  %239 = vrot.lane.b32.xlu0 %v112, 125
  %v240 = vpop.permute.xlu0 %239
  %242 = vrot.lane.b32.xlu0 %v167, 122
  %v243 = vpop.permute.xlu0 %242
  %245 = vrot.lane.b32.xlu0 %v131, 119
  %v246 = vpop.permute.xlu0 %245
  %248 = vrot.lane.b32.xlu0 %v91, 116
  %v249 = vpop.permute.xlu0 %248
  %251 = vrot.lane.b32.xlu0 %v96, 113
  %v252 = vpop.permute.xlu0 %251
  %v254 = vsel %vm116, %v108, %v240
  %v255 = vsel %vm118, %v254, %v243
  %v256 = vsel %vm120, %v255, %v246
  %v257 = vsel %vm20, %v256, %v249
  %v258 = vsel %vm123, %v257, %v252
  %v259 = vlaneseq
  %v260 = vshrl.u32 %v259, 7
  %v261 = vsub.s32 4, %v260
  %v262 = vrot.slane %v94, %v261
  %264 = vrot.lane.b32.xlu0 %v262, 12
  %v265 = vpop.permute.xlu0 %264
  %v267 = vmul.f32 %v91, %v265
  %269 = vrot.lane.b32.xlu0 %v258, 12
  %v270 = vpop.permute.xlu0 %269
  %v272 = vadd.f32 %v267, %v270
  %274 = vrot.lane.b32.xlu0 %v108, 125
  %v275 = vpop.permute.xlu0 %274
  %277 = vrot.lane.b32.xlu0 %v112, 122
  %v278 = vpop.permute.xlu0 %277
  %280 = vrot.lane.b32.xlu0 %v167, 119
  %v281 = vpop.permute.xlu0 %280
  %283 = vrot.lane.b32.xlu0 %v131, 116
  %v284 = vpop.permute.xlu0 %283
  %286 = vrot.lane.b32.xlu0 %v91, 113
  %v287 = vpop.permute.xlu0 %286
  %v289 = vsel %vm116, %v104, %v275
  %v290 = vsel %vm118, %v289, %v278
  %v291 = vsel %vm120, %v290, %v281
  %v292 = vsel %vm20, %v291, %v284
  %v293 = vsel %vm123, %v292, %v287
  %v294 = vlaneseq
  %v295 = vshrl.u32 %v294, 7
  %v296 = vsub.s32 5, %v295
  %v297 = vrot.slane %v94, %v296
  %299 = vrot.lane.b32.xlu0 %v297, 15
  %v300 = vpop.permute.xlu0 %299
  %v302 = vmul.f32 %v91, %v300
  %304 = vrot.lane.b32.xlu0 %v293, 15
  %v305 = vpop.permute.xlu0 %304
  %v307 = vadd.f32 %v302, %v305
  %vm308 = vcmask 23552
  %v309 = vsel %vm308, %v130, %v166
  %vm310 = vcmask 48128
  %v311 = vsel %vm310, %v309, %v202
  %vm312 = vcmask 72704
  %v313 = vsel %vm312, %v311, %v237
  %vm314 = vcmask 97280
  %v315 = vsel %vm314, %v313, %v272
  %vm316 = vcmask 121856
  %v317 = vsel %vm316, %v315, %v307
  %vm318 = vcmask 144384
  %319 = vst.msk [vmem:[%s3] sm:$0x3f] %vm318, %v317
  // Predicated region
  $region14: #{model_forward.1} parent=0 // pred_check
    _
  $region15: #{model_forward.1} parent=0 // pred_check_branch
    %321 = sbr.rel (0) target = $region17
  $region16: #{model_forward.1} parent=0 // pred_region
    _
  $region17: #{model_forward.1} parent=0 // pred_fallthru
    _
  // Predicated region
  $region18: #{model_forward.1} parent=0 // pred_check
    _
  $region19: #{model_forward.1} parent=0 // pred_check_branch
    %323 = sbr.rel (0) target = $region21
  $region20: #{model_forward.1} parent=0 // pred_region
    _
  $region21: #{model_forward.1} parent=0 // pred_fallthru
    _

</llo_original>
